<compile_context>
chip_gen: v7x
topology: tpu7x:2x2x1
jax: 0.10.0
libtpu: 0.0.40
codegen_flags: <defaults>
</compile_context>

<pallas_src>
import jax
import jax.numpy as jnp
from jax.experimental import pallas as pl
from jax.experimental.pallas import tpu as pltpu

LANES = 128


def _round_up(n, m):
    return ((n + m - 1) // m) * m


def mlp_kernel(x_ref, w1_ref, b1_ref, w2_ref, b2_ref, w3_ref, b3_ref, o_ref):
    # Hoist bias loads once per tile.
    b1 = b1_ref[...]          # (1, 128)  VMEM
    b2 = b2_ref[...]          # (1, 64)   VMEM
    b3 = b3_ref[0]            # scalar    SMEM

    # fc1 + ReLU (+ dropout == identity in eval mode)
    h1 = jnp.dot(x_ref[...], w1_ref[...], preferred_element_type=jnp.float32)
    h1 = jnp.maximum(h1 + b1, 0.0)
    # TODO(synk): training-mode dropout would need pltpu.prng_seed /
    # pltpu.prng_random_bits masking; inference mode is the identity.

    # fc2 + ReLU
    h2 = jnp.dot(h1, w2_ref[...], preferred_element_type=jnp.float32)
    h2 = jnp.maximum(h2 + b2, 0.0)

    # fc3: output width is 1, so skip the MXU and use a VPU multiply + XLU
    # lane reduction.  w3_ref is a (1, 64) row broadcast over the batch tile.
    out = jnp.sum(h2 * w3_ref[...], axis=-1) + b3          # (tb,)

    # Lane-dense store: (tb,) -> (1, tb//128, 128).  The relayout runs on
    # VPU/XLU slots that have slack (the kernel is MXU/step-overhead bound).
    o_ref[...] = out.reshape(o_ref.shape).astype(o_ref.dtype)


def simple_mlp_forward(x, params, *, block_b=8192):
    """x: [B, D] float32.  params: dict of w1,b1,w2,b2,w3,b3 with weights
    stored as [in_features, out_features].  Returns [B, 1] float32 logits."""
    x = x.astype(jnp.float32)
    B, D = x.shape

    # Batch tile: multiple of 128 (lane-dense output layout), capped at
    # block_b.  For B >= tb the final partial block is handled by Pallas'
    # block clipping — no HBM-side re-materialization of x.
    tb = min(_round_up(block_b, LANES), _round_up(B, LANES))
    num_tiles = pl.cdiv(B, tb)
    b_pad = num_tiles * tb

    if B < tb:
        # Only possible for batches smaller than one tile; negligible cost.
        x = jnp.pad(x, ((0, tb - B), (0, 0)))

    w1 = params["w1"].astype(jnp.float32)                  # (D, 128)
    w2 = params["w2"].astype(jnp.float32)                  # (128, 64)
    w3_row = jnp.reshape(params["w3"], (1, -1)).astype(jnp.float32)  # (1, 64)
    b1 = params["b1"].astype(jnp.float32)                  # (1, 128)
    b2 = params["b2"].astype(jnp.float32)                  # (1, 64)
    b3 = jnp.reshape(params["b3"], (-1,)).astype(jnp.float32)        # (1,) SMEM scalar

    h1_dim = w1.shape[1]
    h2_dim = w2.shape[1]
    param_bytes = 4 * (w1.size + b1.size + w2.size + b2.size + w3_row.size + b3.size)
    cost = pl.CostEstimate(
        flops=2 * B * (D * h1_dim + h1_dim * h2_dim + h2_dim),
        transcendentals=0,
        bytes_accessed=B * D * 4 + B * 4 + param_bytes,
    )

    def resident(shape):
        return pl.BlockSpec(shape, lambda i: (0,) * len(shape))

    out3d = pl.pallas_call(
        mlp_kernel,
        out_shape=jax.ShapeDtypeStruct((num_tiles, tb // LANES, LANES), jnp.float32),
        grid=(num_tiles,),
        in_specs=[
            pl.BlockSpec((tb, D), lambda i: (i, 0)),       # x: tiled over the batch
            resident(w1.shape), resident(b1.shape),        # weights/biases: resident
            resident(w2.shape), resident(b2.shape),
            resident(w3_row.shape),
            pl.BlockSpec(memory_space=pltpu.MemorySpace.SMEM),  # b3 scalar
        ],
        out_specs=pl.BlockSpec((1, tb // LANES, LANES), lambda i: (i, 0, 0)),
        compiler_params=pltpu.CompilerParams(
            dimension_semantics=("parallel",),
            vmem_limit_bytes=48 * 1024 * 1024,
        ),
        cost_estimate=cost,
    )(x, w1, b1, w2, b2, w3_row, b3)

    # Row-major flatten restores the global batch order; slice off padding.
    return out3d.reshape(b_pad, 1)[:B]


def init_params(key, input_dim):
    """Deterministic init mimicking nn.Linear default:
    U(-1/sqrt(fan_in), +1/sqrt(fan_in)).  Weights stored [in, out]."""
    dims = [(input_dim, 128), (128, 64), (64, 1)]
    params = {}
    keys = jax.random.split(key, 2 * len(dims))
    for i, (fan_in, fan_out) in enumerate(dims):
        bound = 1.0 / jnp.sqrt(jnp.float32(fan_in))
        params[f"w{i+1}"] = jax.random.uniform(
            keys[2 * i], (fan_in, fan_out), jnp.float32, -bound, bound)
        params[f"b{i+1}"] = jax.random.uniform(
            keys[2 * i + 1], (1, fan_out), jnp.float32, -bound, bound)
    return params


def reference_forward(x, params):
    h1 = jnp.maximum(x @ params["w1"] + params["b1"], 0.0)
    h2 = jnp.maximum(h1 @ params["w2"] + params["b2"], 0.0)
    return h2 @ params["w3"] + params["b3"]


if __name__ == "__main__":
    key = jax.random.PRNGKey(0)
    k_x, k_p = jax.random.split(key)

    input_dim = 16  # number of encoded features after get_dummies (synthetic)
    params = init_params(k_p, input_dim)

    # Small batch: single (padded) tile, exercises the small-B path.
    x_small = jax.random.uniform(k_x, (8, input_dim), jnp.float32)
    out_small = jax.block_until_ready(simple_mlp_forward(x_small, params))
    ref_small = reference_forward(x_small, params)
    assert out_small.shape == (8, 1)
    assert jnp.allclose(out_small, ref_small, atol=1e-4, rtol=1e-4)

    # Multi-tile batch with a partial final block (no HBM-side padding of x).
    x_big = jax.random.uniform(jax.random.PRNGKey(1), (1000, input_dim), jnp.float32)
    out_big = jax.block_until_ready(simple_mlp_forward(x_big, params, block_b=256))
    ref_big = reference_forward(x_big, params)
    assert out_big.shape == (1000, 1)
    assert jnp.allclose(out_big, ref_big, atol=1e-4, rtol=1e-4)

    # Default (large) tile path.
    out_def = jax.block_until_ready(simple_mlp_forward(x_big, params))
    assert out_def.shape == (1000, 1)
    assert jnp.allclose(out_def, ref_big, atol=1e-4, rtol=1e-4)

    print("KERNEL_OK")
</pallas_src>

<mosaic_0001>
module attributes {stable_mosaic.version = 11 : i64} {
  func.func @mlp_kernel(%arg0: i32, %arg1: memref<128x16xf32, #tpu.memory_space<vmem>>, %arg2: memref<16x128xf32, #tpu.memory_space<vmem>>, %arg3: memref<1x128xf32, #tpu.memory_space<vmem>>, %arg4: memref<128x64xf32, #tpu.memory_space<vmem>>, %arg5: memref<1x64xf32, #tpu.memory_space<vmem>>, %arg6: memref<1x64xf32, #tpu.memory_space<vmem>>, %arg7: memref<1xf32, #tpu.memory_space<smem>>, %arg8: memref<1x1x128xf32, #tpu.memory_space<vmem>>) attributes {dimension_semantics = [#tpu.dimension_semantics<parallel>], iteration_bounds = array<i64: 1>, scalar_prefetch = 0 : i64, scratch_operands = 0 : i64, tpu.core_type = #tpu.core_type<tc>, window_params = [{transform_indices = @transform_0, window_bounds = array<i64: 128, 16>}, {pipeline_mode = #tpu.pipeline_mode<synchronous>, transform_indices = @transform_1, window_bounds = array<i64: 16, 128>}, {pipeline_mode = #tpu.pipeline_mode<synchronous>, transform_indices = @transform_2, window_bounds = array<i64: 1, 128>}, {pipeline_mode = #tpu.pipeline_mode<synchronous>, transform_indices = @transform_3, window_bounds = array<i64: 128, 64>}, {pipeline_mode = #tpu.pipeline_mode<synchronous>, transform_indices = @transform_4, window_bounds = array<i64: 1, 64>}, {pipeline_mode = #tpu.pipeline_mode<synchronous>, transform_indices = @transform_5, window_bounds = array<i64: 1, 64>}, {transform_indices = @transform_6, window_bounds = array<i64: 1>}, {transform_indices = @transform_7, window_bounds = array<i64: 1, 1, 128>}]} {
    %c0 = arith.constant 0 : index
    %c0_0 = arith.constant 0 : index
    %0 = vector.load %arg3[%c0, %c0_0] : memref<1x128xf32, #tpu.memory_space<vmem>>, vector<1x128xf32>
    %c0_1 = arith.constant 0 : index
    %c0_2 = arith.constant 0 : index
    %1 = vector.load %arg5[%c0_1, %c0_2] : memref<1x64xf32, #tpu.memory_space<vmem>>, vector<1x64xf32>
    %c0_3 = arith.constant 0 : index
    %2 = memref.load %arg7[%c0_3] : memref<1xf32, #tpu.memory_space<smem>>
    %c0_4 = arith.constant 0 : index
    %c0_5 = arith.constant 0 : index
    %3 = vector.load %arg1[%c0_4, %c0_5] : memref<128x16xf32, #tpu.memory_space<vmem>>, vector<128x16xf32>
    %c0_6 = arith.constant 0 : index
    %c0_7 = arith.constant 0 : index
    %4 = vector.load %arg2[%c0_6, %c0_7] : memref<16x128xf32, #tpu.memory_space<vmem>>, vector<16x128xf32>
    %cst = arith.constant dense<0.000000e+00> : vector<128x128xf32>
    %5 = tpu.matmul %3, %4, %cst {dimension_numbers = #tpu.dot_dimension_numbers<[1], [0], [0], [1], [0, 0, 1, 1], [], []>} : vector<128x16xf32>, vector<16x128xf32>, vector<128x128xf32> -> vector<128x128xf32>
    %6 = vector.broadcast %0 : vector<1x128xf32> to vector<128x128xf32>
    %7 = arith.addf %5, %6 : vector<128x128xf32>
    %cst_8 = arith.constant 0.000000e+00 : f32
    %8 = vector.broadcast %cst_8 : f32 to vector<128x128xf32>
    %9 = arith.maximumf %7, %8 : vector<128x128xf32>
    %c0_9 = arith.constant 0 : index
    %c0_10 = arith.constant 0 : index
    %10 = vector.load %arg4[%c0_9, %c0_10] : memref<128x64xf32, #tpu.memory_space<vmem>>, vector<128x64xf32>
    %cst_11 = arith.constant dense<0.000000e+00> : vector<128x64xf32>
    %11 = tpu.matmul %9, %10, %cst_11 {dimension_numbers = #tpu.dot_dimension_numbers<[1], [0], [0], [1], [0, 0, 1, 1], [], []>} : vector<128x128xf32>, vector<128x64xf32>, vector<128x64xf32> -> vector<128x64xf32>
    %12 = vector.broadcast %1 : vector<1x64xf32> to vector<128x64xf32>
    %13 = arith.addf %11, %12 : vector<128x64xf32>
    %cst_12 = arith.constant 0.000000e+00 : f32
    %14 = vector.broadcast %cst_12 : f32 to vector<128x64xf32>
    %15 = arith.maximumf %13, %14 : vector<128x64xf32>
    %c0_13 = arith.constant 0 : index
    %c0_14 = arith.constant 0 : index
    %16 = vector.load %arg6[%c0_13, %c0_14] : memref<1x64xf32, #tpu.memory_space<vmem>>, vector<1x64xf32>
    %17 = vector.broadcast %16 : vector<1x64xf32> to vector<128x64xf32>
    %18 = arith.mulf %15, %17 : vector<128x64xf32>
    %cst_15 = arith.constant dense<0.000000e+00> : vector<128xf32>
    %19 = vector.multi_reduction <add>, %18, %cst_15 [1] : vector<128x64xf32> to vector<128xf32>
    %20 = vector.broadcast %2 : f32 to vector<128xf32>
    %21 = arith.addf %19, %20 : vector<128xf32>
    %22 = vector.shape_cast %21 : vector<128xf32> to vector<1x1x128xf32>
    %c0_16 = arith.constant 0 : index
    %c0_17 = arith.constant 0 : index
    %c0_18 = arith.constant 0 : index
    %23 = vector.load %arg8[%c0_16, %c0_17, %c0_18] : memref<1x1x128xf32, #tpu.memory_space<vmem>>, vector<1x1x128xf32>
    tpu.vector_store %arg8[%c0_16, %c0_17, %c0_18], %22 {strides = array<i32>} : memref<1x1x128xf32, #tpu.memory_space<vmem>>, vector<1x1x128xf32>,
    return
  }
  func.func @transform_0(%arg0: i32) -> (i32, i32) {
    %c0_i32 = arith.constant 0 : i32
    %c0_i32_0 = arith.constant 0 : i32
    return %arg0, %c0_i32 : i32, i32
  }
  func.func @transform_1(%arg0: i32) -> (i32, i32) {
    %c0_i32 = arith.constant 0 : i32
    %c0_i32_0 = arith.constant 0 : i32
    %c0_i32_1 = arith.constant 0 : i32
    return %c0_i32, %c0_i32_0 : i32, i32
  }
  func.func @transform_2(%arg0: i32) -> (i32, i32) {
    %c0_i32 = arith.constant 0 : i32
    %c0_i32_0 = arith.constant 0 : i32
    %c0_i32_1 = arith.constant 0 : i32
    return %c0_i32, %c0_i32_0 : i32, i32
  }
  func.func @transform_3(%arg0: i32) -> (i32, i32) {
    %c0_i32 = arith.constant 0 : i32
    %c0_i32_0 = arith.constant 0 : i32
    %c0_i32_1 = arith.constant 0 : i32
    return %c0_i32, %c0_i32_0 : i32, i32
  }
  func.func @transform_4(%arg0: i32) -> (i32, i32) {
    %c0_i32 = arith.constant 0 : i32
    %c0_i32_0 = arith.constant 0 : i32
    %c0_i32_1 = arith.constant 0 : i32
    return %c0_i32, %c0_i32_0 : i32, i32
  }
  func.func @transform_5(%arg0: i32) -> (i32, i32) {
    %c0_i32 = arith.constant 0 : i32
    %c0_i32_0 = arith.constant 0 : i32
    %c0_i32_1 = arith.constant 0 : i32
    return %c0_i32, %c0_i32_0 : i32, i32
  }
  func.func @transform_6(%arg0: i32) -> i32 {
    %c0_i32 = arith.constant 0 : i32
    %c0_i32_0 = arith.constant 0 : i32
    return %c0_i32 : i32
  }
  func.func @transform_7(%arg0: i32) -> (i32, i32, i32) {
    %c0_i32 = arith.constant 0 : i32
    %c0_i32_0 = arith.constant 0 : i32
    %c0_i32_1 = arith.constant 0 : i32
    return %arg0, %c0_i32, %c0_i32_0 : i32, i32, i32
  }
}

</mosaic_0001>

<llo_original>
// kernel: tpu_custom_call.1
$region0: #{tpu_custom_call.1}
  #allocation0 [shape = 'u32[]', space=smem, size = 0x4, offset = 0x4, fixed_abs, tag = 'smem constant byte address 0x4 - core index']
  #allocation1 [shape = 'u32[144,128]{1,0:T(1,128)}', space=vmem, size = 0x12000, scoped, tag = 'internal scratch']
  #allocation2 [shape = 'f32[1]{0:T(128)S(6)}', space=smem, size = 0x200, scoped, tag = 'scoped memory for tpu_custom_call.1']
  %s0 = inlined_call_operand.vmem [shape: f32[128,16], index: 0, kind: input, shape index: {}]
  %s1 = inlined_call_operand.vmem [shape: f32[16,128], index: 1, kind: input, shape index: {}]
  %s2 = inlined_call_operand.vmem [shape: f32[1,128], index: 2, kind: input, shape index: {}]
  %s3 = inlined_call_operand.vmem [shape: f32[128,64], index: 3, kind: input, shape index: {}]
  %s4 = inlined_call_operand.vmem [shape: f32[1,64], index: 4, kind: input, shape index: {}]
  %s5 = inlined_call_operand.vmem [shape: f32[1,64], index: 5, kind: input, shape index: {}]
  %s6 = inlined_call_operand.<no memory space> [shape: f32[1], index: 6, kind: input, shape index: {}]
  %s7 = inlined_call_operand.hbm [shape: f32[1,1,128], index: 7, kind: output, shape index: {}]
  %s8 = sld [smem:[#allocation0]]
  $region38: #{tpu_custom_call.1} parent=0
    _
  %s10 = ssub.s32 1, %s8
  %s11 = scalar_select 0, %s10, %s8
  %12 = sst [smem:[#allocation2]] %s6
  $region1: #{tpu_custom_call.1} parent=0
    #allocation3 [shape = 'u8[512]{0}', space=vmem, size = 0x400, scoped, tag = 'output window, operand 0, single buffered']
    #allocation4 [shape = 's32[1]{0}', space=sflag, size = 0x4, scoped, tag = 'scoped memory for tpu_custom_call.1']
    %13 = vsyncpa [#allocation4], 0
    // Predicated region
    $region2: #{tpu_custom_call.1} parent=1 // pred_check
      _
    $region3: #{tpu_custom_call.1} parent=1 // pred_check_branch
      %15 = sbr.rel (0) target = $region5
    $region4: #{tpu_custom_call.1} parent=1 // pred_region
      _
    $region5: #{tpu_custom_call.1} parent=1 // pred_fallthru
      _
    // Predicated region
    $region6: #{tpu_custom_call.1} parent=1 // pred_check
      _
    $region7: #{tpu_custom_call.1} parent=1 // pred_check_branch
      %17 = sbr.rel (0) target = $region9
    $region8: #{tpu_custom_call.1} parent=1 // pred_region
      _
    $region9: #{tpu_custom_call.1} parent=1 // pred_fallthru
      _
    // Predicated region
    $region10: #{tpu_custom_call.1} parent=1 // pred_check
      _
    $region11: #{tpu_custom_call.1} parent=1 // pred_check_branch
      %19 = sbr.rel (0) target = $region13
    $region12: #{tpu_custom_call.1} parent=1 // pred_region
      _
    $region13: #{tpu_custom_call.1} parent=1 // pred_fallthru
      _
    // Predicated region
    $region14: #{tpu_custom_call.1} parent=1 // pred_check
      _
    $region15: #{tpu_custom_call.1} parent=1 // pred_check_branch
      %21 = sbr.rel (0) target = $region17
    $region16: #{tpu_custom_call.1} parent=1 // pred_region
      _
    $region17: #{tpu_custom_call.1} parent=1 // pred_fallthru
      _
    // Predicated region
    $region18: #{tpu_custom_call.1} parent=1 // pred_check
      _
    $region19: #{tpu_custom_call.1} parent=1 // pred_check_branch
      %23 = sbr.rel (0) target = $region21
    $region20: #{tpu_custom_call.1} parent=1 // pred_region
      _
    $region21: #{tpu_custom_call.1} parent=1 // pred_fallthru
      _
    // Predicated region
    $region22: #{tpu_custom_call.1} parent=1 // pred_check
      _
    $region23: #{tpu_custom_call.1} parent=1 // pred_check_branch
      %25 = sbr.rel (0) target = $region25
    $region24: #{tpu_custom_call.1} parent=1 // pred_region
      _
    $region25: #{tpu_custom_call.1} parent=1 // pred_fallthru
      _
    // Predicated region
    $region26: #{tpu_custom_call.1} parent=1 // pred_check
      _
    $region27: #{tpu_custom_call.1} parent=1 // pred_check_branch
      %27 = sbr.rel (0) target = $region29
    $region28: #{tpu_custom_call.1} parent=1 // pred_region
      _
    $region29: #{tpu_custom_call.1} parent=1 // pred_fallthru
      _
    %v28 = vld [vmem:[%s2] sm:$0x1]
    %v29 = vld [vmem:[%s4] sm:$0x1]
    %s30 = sld [smem:[#allocation2]]
    %v31 = vld [vmem:[%s0] sm:$0xff]
    %v32 = vld [vmem:[%s0 + $0x8] sm:$0xff]
    %v33 = vld [vmem:[%s0 + $0x10] sm:$0xff]
    %v34 = vld [vmem:[%s0 + $0x18] sm:$0xff]
    %v35 = vld [vmem:[%s0 + $0x20] sm:$0xff]
    %v36 = vld [vmem:[%s0 + $0x28] sm:$0xff]
    %v37 = vld [vmem:[%s0 + $0x30] sm:$0xff]
    %v38 = vld [vmem:[%s0 + $0x38] sm:$0xff]
    %v39 = vld [vmem:[%s0 + $0x40] sm:$0xff]
    %v40 = vld [vmem:[%s0 + $0x48] sm:$0xff]
    %v41 = vld [vmem:[%s0 + $0x50] sm:$0xff]
    %v42 = vld [vmem:[%s0 + $0x58] sm:$0xff]
    %v43 = vld [vmem:[%s0 + $0x60] sm:$0xff]
    %v44 = vld [vmem:[%s0 + $0x68] sm:$0xff]
    %v45 = vld [vmem:[%s0 + $0x70] sm:$0xff]
    %v46 = vld [vmem:[%s0 + $0x78] sm:$0xff]
    %v47 = vld [vmem:[%s1] sm:$0xff]
    %v48 = vld [vmem:[%s1 + $0x8] sm:$0xff]
    %v50 = vlaneseq
    %v51 = vshrl.u32 %v50, 7
    %v52 = vsub.s32 0, %v51
    %v53 = vrot.slane %v28, %v52
    %vm55 = vcmask 130048
    %v57 = vsel %vm55, %v31, 0
    %v60 = vsel %vm55, %v32, 0
    %v63 = vsel %vm55, %v33, 0
    %v66 = vsel %vm55, %v34, 0
    %v69 = vsel %vm55, %v35, 0
    %v72 = vsel %vm55, %v36, 0
    %v75 = vsel %vm55, %v37, 0
    %v78 = vsel %vm55, %v38, 0
    %v81 = vsel %vm55, %v39, 0
    %v84 = vsel %vm55, %v40, 0
    %v87 = vsel %vm55, %v41, 0
    %v90 = vsel %vm55, %v42, 0
    %v93 = vsel %vm55, %v43, 0
    %v96 = vsel %vm55, %v44, 0
    %v99 = vsel %vm55, %v45, 0
    %v102 = vsel %vm55, %v46, 0
    %104 = vmatprep.subr.mxu0 0.0
    %105 = vmatpush1.msra.mxu0 %v47
    %106 = vmatprep.subr.mxu0 0.0
    %107 = vmatpush1.msra.mxu0 %v48
    %108 = vmatprep.subr.mxu0 0.0
    %109 = vmatpush1.msra.mxu0 0.0
    %110 = vmatprep.subr.mxu0 0.0
    %111 = vmatpush1.msra.mxu0 0.0
    %112 = vmatprep.subr.mxu0 0.0
    %113 = vmatpush1.msra.mxu0 0.0
    %114 = vmatprep.subr.mxu0 0.0
    %115 = vmatpush1.msra.mxu0 0.0
    %116 = vmatprep.subr.mxu0 0.0
    %117 = vmatpush1.msra.mxu0 0.0
    %118 = vmatprep.subr.mxu0 0.0
    %119 = vmatpush1.msra.mxu0 0.0
    %120 = vmatprep.subr.mxu0 0.0
    %121 = vmatpush1.msra.mxu0 0.0
    %122 = vmatprep.subr.mxu0 0.0
    %123 = vmatpush1.msra.mxu0 0.0
    %124 = vmatprep.subr.mxu0 0.0
    %125 = vmatpush1.msra.mxu0 0.0
    %126 = vmatprep.subr.mxu0 0.0
    %127 = vmatpush1.msra.mxu0 0.0
    %128 = vmatprep.subr.mxu0 0.0
    %129 = vmatpush1.msra.mxu0 0.0
    %130 = vmatprep.subr.mxu0 0.0
    %131 = vmatpush1.msra.mxu0 0.0
    %132 = vmatprep.subr.mxu0 0.0
    %133 = vmatpush1.msra.mxu0 0.0
    %134 = vmatprep.subr.mxu0 0.0
    %135 = vmatpush1.msra.mxu0 0.0
    %136 = vmatprep.subr.mxu0 0.0
    %137 = vmatpush1.msra.mxu0 0.0
    %138 = vmatprep.subr.mxu0 0.0
    %139 = vmatpush1.msra.mxu0 0.0
    %140 = vmatprep.subr.mxu0 0.0
    %141 = vmatpush1.msra.mxu0 0.0
    %142 = vmatprep.subr.mxu0 0.0
    %143 = vmatpush1.msra.mxu0 0.0
    %144 = vmatprep.subr.mxu0 0.0
    %145 = vmatpush1.msra.mxu0 0.0
    %146 = vmatprep.subr.mxu0 0.0
    %147 = vmatpush1.msra.mxu0 0.0
    %148 = vmatprep.subr.mxu0 0.0
    %149 = vmatpush1.msra.mxu0 0.0
    %150 = vmatprep.subr.mxu0 0.0
    %151 = vmatpush1.msra.mxu0 0.0
    %152 = vmatprep.subr.mxu0 0.0
    %153 = vmatpush1.msra.mxu0 0.0
    %154 = vmatprep.subr.mxu0 0.0
    %155 = vmatpush1.msra.mxu0 0.0
    %156 = vmatprep.subr.mxu0 0.0
    %157 = vmatpush1.msra.mxu0 0.0
    %158 = vmatprep.subr.mxu0 0.0
    %159 = vmatpush1.msra.mxu0 0.0
    %160 = vmatprep.subr.mxu0 0.0
    %161 = vmatpush1.msra.mxu0 0.0
    %162 = vmatprep.subr.mxu0 0.0
    %163 = vmatpush1.msra.mxu0 0.0
    %164 = vmatprep.subr.mxu0 0.0
    %165 = vmatpush1.msra.mxu0 0.0
    %166 = vmatprep.subr.mxu0 0.0
    %167 = vmatpush1.msra.mxu0 0.0
    %168 = vmatprep.mubr.f32.mxu0 0.0
    %169 = vmatmul.mubr.f32.gmra.mrb[0].mxu0 %v57
    %v170 = vpop.f32.mrb[0].mxu0
    %v171 = vadd.f32 %v53, %v170
    %v172 = vpop.f32.mrb[0].mxu0
    %173 = vmatprep.mubr.f32.mxu0 0.0
    %174 = vmatmul.mubr.f32.gmra.mrb[0].mxu0 %v60
    %v175 = vpop.f32.mrb[0].mxu0
    %v176 = vadd.f32 %v53, %v175
    %v177 = vpop.f32.mrb[0].mxu0
    %178 = vmatprep.mubr.f32.mxu0 0.0
    %179 = vmatmul.mubr.f32.gmra.mrb[0].mxu0 %v63
    %v180 = vpop.f32.mrb[0].mxu0
    %v181 = vadd.f32 %v53, %v180
    %v182 = vpop.f32.mrb[0].mxu0
    %183 = vmatprep.mubr.f32.mxu0 0.0
    %184 = vmatmul.mubr.f32.gmra.mrb[0].mxu0 %v66
    %v185 = vpop.f32.mrb[0].mxu0
    %v186 = vadd.f32 %v53, %v185
    %v187 = vpop.f32.mrb[0].mxu0
    %188 = vmatprep.mubr.f32.mxu0 0.0
    %189 = vmatmul.mubr.f32.gmra.mrb[0].mxu0 %v69
    %v190 = vpop.f32.mrb[0].mxu0
    %v191 = vadd.f32 %v53, %v190
    %v192 = vpop.f32.mrb[0].mxu0
    %193 = vmatprep.mubr.f32.mxu0 0.0
    %194 = vmatmul.mubr.f32.gmra.mrb[0].mxu0 %v72
    %v195 = vpop.f32.mrb[0].mxu0
    %v196 = vadd.f32 %v53, %v195
    %v197 = vpop.f32.mrb[0].mxu0
    %198 = vmatprep.mubr.f32.mxu0 0.0
    %199 = vmatmul.mubr.f32.gmra.mrb[0].mxu0 %v75
    %v200 = vpop.f32.mrb[0].mxu0
    %v201 = vadd.f32 %v53, %v200
    %v202 = vpop.f32.mrb[0].mxu0
    %203 = vmatprep.mubr.f32.mxu0 0.0
    %204 = vmatmul.mubr.f32.gmra.mrb[0].mxu0 %v78
    %v205 = vpop.f32.mrb[0].mxu0
    %v206 = vadd.f32 %v53, %v205
    %v207 = vpop.f32.mrb[0].mxu0
    %208 = vmatprep.mubr.f32.mxu0 0.0
    %209 = vmatmul.mubr.f32.gmra.mrb[0].mxu0 %v81
    %v210 = vpop.f32.mrb[0].mxu0
    %v211 = vadd.f32 %v53, %v210
    %v212 = vpop.f32.mrb[0].mxu0
    %213 = vmatprep.mubr.f32.mxu0 0.0
    %214 = vmatmul.mubr.f32.gmra.mrb[0].mxu0 %v84
    %v215 = vpop.f32.mrb[0].mxu0
    %v216 = vadd.f32 %v53, %v215
    %v217 = vpop.f32.mrb[0].mxu0
    %218 = vmatprep.mubr.f32.mxu0 0.0
    %219 = vmatmul.mubr.f32.gmra.mrb[0].mxu0 %v87
    %v220 = vpop.f32.mrb[0].mxu0
    %v221 = vadd.f32 %v53, %v220
    %v222 = vpop.f32.mrb[0].mxu0
    %223 = vmatprep.mubr.f32.mxu0 0.0
    %224 = vmatmul.mubr.f32.gmra.mrb[0].mxu0 %v90
    %v225 = vpop.f32.mrb[0].mxu0
    %v226 = vadd.f32 %v53, %v225
    %v227 = vpop.f32.mrb[0].mxu0
    %228 = vmatprep.mubr.f32.mxu0 0.0
    %229 = vmatmul.mubr.f32.gmra.mrb[0].mxu0 %v93
    %v230 = vpop.f32.mrb[0].mxu0
    %v231 = vadd.f32 %v53, %v230
    %v232 = vpop.f32.mrb[0].mxu0
    %233 = vmatprep.mubr.f32.mxu0 0.0
    %234 = vmatmul.mubr.f32.gmra.mrb[0].mxu0 %v96
    %v235 = vpop.f32.mrb[0].mxu0
    %v236 = vadd.f32 %v53, %v235
    %v237 = vpop.f32.mrb[0].mxu0
    %238 = vmatprep.mubr.f32.mxu0 0.0
    %239 = vmatmul.mubr.f32.gmra.mrb[0].mxu0 %v99
    %v240 = vpop.f32.mrb[0].mxu0
    %v241 = vadd.f32 %v53, %v240
    %v242 = vpop.f32.mrb[0].mxu0
    %243 = vmatprep.mubr.f32.mxu0 0.0
    %244 = vmatmul.mubr.f32.gmra.mrb[0].mxu0 %v102
    %v245 = vpop.f32.mrb[0].mxu0
    %v246 = vadd.f32 %v53, %v245
    %v247 = vpop.f32.mrb[0].mxu0
    %248 = vdwg.mxu0
    %v249 = vmax.f32 %v171, 0.0
    %v250 = vmax.f32 %v176, 0.0
    %v251 = vmax.f32 %v181, 0.0
    %v252 = vmax.f32 %v186, 0.0
    %v253 = vmax.f32 %v191, 0.0
    %v254 = vmax.f32 %v196, 0.0
    %v255 = vmax.f32 %v201, 0.0
    %v256 = vmax.f32 %v206, 0.0
    %v257 = vmax.f32 %v211, 0.0
    %v258 = vmax.f32 %v216, 0.0
    %v259 = vmax.f32 %v221, 0.0
    %v260 = vmax.f32 %v226, 0.0
    %v261 = vmax.f32 %v231, 0.0
    %v262 = vmax.f32 %v236, 0.0
    %v263 = vmax.f32 %v241, 0.0
    %v264 = vmax.f32 %v246, 0.0
    %v265 = vld [vmem:[%s3] sm:$0xff]
    %v266 = vld [vmem:[%s3 + $0x8] sm:$0xff]
    %v267 = vld [vmem:[%s3 + $0x10] sm:$0xff]
    %v268 = vld [vmem:[%s3 + $0x18] sm:$0xff]
    %v269 = vld [vmem:[%s3 + $0x20] sm:$0xff]
    %v270 = vld [vmem:[%s3 + $0x28] sm:$0xff]
    %v271 = vld [vmem:[%s3 + $0x30] sm:$0xff]
    %v272 = vld [vmem:[%s3 + $0x38] sm:$0xff]
    %v273 = vld [vmem:[%s3 + $0x40] sm:$0xff]
    %v274 = vld [vmem:[%s3 + $0x48] sm:$0xff]
    %v275 = vld [vmem:[%s3 + $0x50] sm:$0xff]
    %v276 = vld [vmem:[%s3 + $0x58] sm:$0xff]
    %v277 = vld [vmem:[%s3 + $0x60] sm:$0xff]
    %v278 = vld [vmem:[%s3 + $0x68] sm:$0xff]
    %v279 = vld [vmem:[%s3 + $0x70] sm:$0xff]
    %v280 = vld [vmem:[%s3 + $0x78] sm:$0xff]
    %v282 = vlaneseq
    %v283 = vshrl.u32 %v282, 7
    %v284 = vsub.s32 0, %v283
    %v285 = vrot.slane %v29, %v284
    %287 = vmatprep.subr.mxu0 0.0
    %288 = vmatpush1.msra.mxu0 %v265
    %289 = vmatprep.subr.mxu0 0.0
    %290 = vmatpush1.msra.mxu0 %v266
    %291 = vmatprep.subr.mxu0 0.0
    %292 = vmatpush1.msra.mxu0 %v267
    %293 = vmatprep.subr.mxu0 0.0
    %294 = vmatpush1.msra.mxu0 %v268
    %295 = vmatprep.subr.mxu0 0.0
    %296 = vmatpush1.msra.mxu0 %v269
    %297 = vmatprep.subr.mxu0 0.0
    %298 = vmatpush1.msra.mxu0 %v270
    %299 = vmatprep.subr.mxu0 0.0
    %300 = vmatpush1.msra.mxu0 %v271
    %301 = vmatprep.subr.mxu0 0.0
    %302 = vmatpush1.msra.mxu0 %v272
    %303 = vmatprep.subr.mxu0 0.0
    %304 = vmatpush1.msra.mxu0 %v273
    %305 = vmatprep.subr.mxu0 0.0
    %306 = vmatpush1.msra.mxu0 %v274
    %307 = vmatprep.subr.mxu0 0.0
    %308 = vmatpush1.msra.mxu0 %v275
    %309 = vmatprep.subr.mxu0 0.0
    %310 = vmatpush1.msra.mxu0 %v276
    %311 = vmatprep.subr.mxu0 0.0
    %312 = vmatpush1.msra.mxu0 %v277
    %313 = vmatprep.subr.mxu0 0.0
    %314 = vmatpush1.msra.mxu0 %v278
    %315 = vmatprep.subr.mxu0 0.0
    %316 = vmatpush1.msra.mxu0 %v279
    %317 = vmatprep.subr.mxu0 0.0
    %318 = vmatpush1.msra.mxu0 %v280
    %319 = vmatprep.subr.mxu0 0.0
    %320 = vmatpush1.msra.mxu0 0.0
    %321 = vmatprep.subr.mxu0 0.0
    %322 = vmatpush1.msra.mxu0 0.0
    %323 = vmatprep.subr.mxu0 0.0
    %324 = vmatpush1.msra.mxu0 0.0
    %325 = vmatprep.subr.mxu0 0.0
    %326 = vmatpush1.msra.mxu0 0.0
    %327 = vmatprep.subr.mxu0 0.0
    %328 = vmatpush1.msra.mxu0 0.0
    %329 = vmatprep.subr.mxu0 0.0
    %330 = vmatpush1.msra.mxu0 0.0
    %331 = vmatprep.subr.mxu0 0.0
    %332 = vmatpush1.msra.mxu0 0.0
    %333 = vmatprep.subr.mxu0 0.0
    %334 = vmatpush1.msra.mxu0 0.0
    %335 = vmatprep.subr.mxu0 0.0
    %336 = vmatpush1.msra.mxu0 0.0
    %337 = vmatprep.subr.mxu0 0.0
    %338 = vmatpush1.msra.mxu0 0.0
    %339 = vmatprep.subr.mxu0 0.0
    %340 = vmatpush1.msra.mxu0 0.0
    %341 = vmatprep.subr.mxu0 0.0
    %342 = vmatpush1.msra.mxu0 0.0
    %343 = vmatprep.subr.mxu0 0.0
    %344 = vmatpush1.msra.mxu0 0.0
    %345 = vmatprep.subr.mxu0 0.0
    %346 = vmatpush1.msra.mxu0 0.0
    %347 = vmatprep.subr.mxu0 0.0
    %348 = vmatpush1.msra.mxu0 0.0
    %349 = vmatprep.subr.mxu0 0.0
    %350 = vmatpush1.msra.mxu0 0.0
    %351 = vmatprep.mubr.f32.mxu0 0.0
    %352 = vmatmul.mubr.f32.gmra.mrb[0].mxu0 %v249
    %v353 = vpop.f32.mrb[0].mxu0
    %v354 = vadd.f32 %v285, %v353
    %v355 = vpop.f32.mrb[0].mxu0
    %356 = vmatprep.mubr.f32.mxu0 0.0
    %357 = vmatmul.mubr.f32.gmra.mrb[0].mxu0 %v250
    %v358 = vpop.f32.mrb[0].mxu0
    %v359 = vadd.f32 %v285, %v358
    %v360 = vpop.f32.mrb[0].mxu0
    %361 = vmatprep.mubr.f32.mxu0 0.0
    %362 = vmatmul.mubr.f32.gmra.mrb[0].mxu0 %v251
    %v363 = vpop.f32.mrb[0].mxu0
    %v364 = vadd.f32 %v285, %v363
    %v365 = vpop.f32.mrb[0].mxu0
    %366 = vmatprep.mubr.f32.mxu0 0.0
    %367 = vmatmul.mubr.f32.gmra.mrb[0].mxu0 %v252
    %v368 = vpop.f32.mrb[0].mxu0
    %v369 = vadd.f32 %v285, %v368
    %v370 = vpop.f32.mrb[0].mxu0
    %371 = vmatprep.mubr.f32.mxu0 0.0
    %372 = vmatmul.mubr.f32.gmra.mrb[0].mxu0 %v253
    %v373 = vpop.f32.mrb[0].mxu0
    %v374 = vadd.f32 %v285, %v373
    %v375 = vpop.f32.mrb[0].mxu0
    %376 = vmatprep.mubr.f32.mxu0 0.0
    %377 = vmatmul.mubr.f32.gmra.mrb[0].mxu0 %v254
    %v378 = vpop.f32.mrb[0].mxu0
    %v379 = vadd.f32 %v285, %v378
    %v380 = vpop.f32.mrb[0].mxu0
    %381 = vmatprep.mubr.f32.mxu0 0.0
    %382 = vmatmul.mubr.f32.gmra.mrb[0].mxu0 %v255
    %v383 = vpop.f32.mrb[0].mxu0
    %v384 = vadd.f32 %v285, %v383
    %v385 = vpop.f32.mrb[0].mxu0
    %386 = vmatprep.mubr.f32.mxu0 0.0
    %387 = vmatmul.mubr.f32.gmra.mrb[0].mxu0 %v256
    %v388 = vpop.f32.mrb[0].mxu0
    %v389 = vadd.f32 %v285, %v388
    %v390 = vpop.f32.mrb[0].mxu0
    %391 = vmatprep.mubr.f32.mxu0 0.0
    %392 = vmatmul.mubr.f32.gmra.mrb[0].mxu0 %v257
    %v393 = vpop.f32.mrb[0].mxu0
    %v394 = vadd.f32 %v285, %v393
    %v395 = vpop.f32.mrb[0].mxu0
    %396 = vmatprep.mubr.f32.mxu0 0.0
    %397 = vmatmul.mubr.f32.gmra.mrb[0].mxu0 %v258
    %v398 = vpop.f32.mrb[0].mxu0
    %v399 = vadd.f32 %v285, %v398
    %v400 = vpop.f32.mrb[0].mxu0
    %401 = vmatprep.mubr.f32.mxu0 0.0
    %402 = vmatmul.mubr.f32.gmra.mrb[0].mxu0 %v259
    %v403 = vpop.f32.mrb[0].mxu0
    %v404 = vadd.f32 %v285, %v403
    %v405 = vpop.f32.mrb[0].mxu0
    %406 = vmatprep.mubr.f32.mxu0 0.0
    %407 = vmatmul.mubr.f32.gmra.mrb[0].mxu0 %v260
    %v408 = vpop.f32.mrb[0].mxu0
    %v409 = vadd.f32 %v285, %v408
    %v410 = vpop.f32.mrb[0].mxu0
    %411 = vmatprep.mubr.f32.mxu0 0.0
    %412 = vmatmul.mubr.f32.gmra.mrb[0].mxu0 %v261
    %v413 = vpop.f32.mrb[0].mxu0
    %v414 = vadd.f32 %v285, %v413
    %v415 = vpop.f32.mrb[0].mxu0
    %416 = vmatprep.mubr.f32.mxu0 0.0
    %417 = vmatmul.mubr.f32.gmra.mrb[0].mxu0 %v262
    %v418 = vpop.f32.mrb[0].mxu0
    %v419 = vadd.f32 %v285, %v418
    %v420 = vpop.f32.mrb[0].mxu0
    %421 = vmatprep.mubr.f32.mxu0 0.0
    %422 = vmatmul.mubr.f32.gmra.mrb[0].mxu0 %v263
    %v423 = vpop.f32.mrb[0].mxu0
    %v424 = vadd.f32 %v285, %v423
    %v425 = vpop.f32.mrb[0].mxu0
    %426 = vmatprep.mubr.f32.mxu0 0.0
    %427 = vmatmul.mubr.f32.gmra.mrb[0].mxu0 %v264
    %v428 = vpop.f32.mrb[0].mxu0
    %v429 = vadd.f32 %v285, %v428
    %v430 = vpop.f32.mrb[0].mxu0
    %431 = vdwg.mxu0
    %v432 = vmax.f32 %v354, 0.0
    %v433 = vmax.f32 %v359, 0.0
    %v434 = vmax.f32 %v364, 0.0
    %v435 = vmax.f32 %v369, 0.0
    %v436 = vmax.f32 %v374, 0.0
    %v437 = vmax.f32 %v379, 0.0
    %v438 = vmax.f32 %v384, 0.0
    %v439 = vmax.f32 %v389, 0.0
    %v440 = vmax.f32 %v394, 0.0
    %v441 = vmax.f32 %v399, 0.0
    %v442 = vmax.f32 %v404, 0.0
    %v443 = vmax.f32 %v409, 0.0
    %v444 = vmax.f32 %v414, 0.0
    %v445 = vmax.f32 %v419, 0.0
    %v446 = vmax.f32 %v424, 0.0
    %v447 = vmax.f32 %v429, 0.0
    %v448 = vld [vmem:[%s5] sm:$0x1]
    %v450 = vlaneseq
    %v451 = vshrl.u32 %v450, 7
    %v452 = vsub.s32 0, %v451
    %v453 = vrot.slane %v448, %v452
    %v455 = vmul.f32 %v432, %v453
    %v456 = vmul.f32 %v433, %v453
    %v457 = vmul.f32 %v434, %v453
    %v458 = vmul.f32 %v435, %v453
    %v459 = vmul.f32 %v436, %v453
    %v460 = vmul.f32 %v437, %v453
    %v461 = vmul.f32 %v438, %v453
    %v462 = vmul.f32 %v439, %v453
    %v463 = vmul.f32 %v440, %v453
    %v464 = vmul.f32 %v441, %v453
    %v465 = vmul.f32 %v442, %v453
    %v466 = vmul.f32 %v443, %v453
    %v467 = vmul.f32 %v444, %v453
    %v468 = vmul.f32 %v445, %v453
    %v469 = vmul.f32 %v446, %v453
    %v470 = vmul.f32 %v447, %v453
    %vm471 = vcmask 523264
    %v472 = vsel %vm471, %v455, 0.0
    %473 = vadd.xlane.f32.xlu0 %v472
    %v474 = vpop.xlane.xlu0 %473
    %v475 = vsel %vm471, %v456, 0.0
    %476 = vadd.xlane.f32.xlu0 %v475
    %v477 = vpop.xlane.xlu0 %476
    %v478 = vsel %vm471, %v457, 0.0
    %479 = vadd.xlane.f32.xlu0 %v478
    %v480 = vpop.xlane.xlu0 %479
    %v481 = vsel %vm471, %v458, 0.0
    %482 = vadd.xlane.f32.xlu0 %v481
    %v483 = vpop.xlane.xlu0 %482
    %v484 = vsel %vm471, %v459, 0.0
    %485 = vadd.xlane.f32.xlu0 %v484
    %v486 = vpop.xlane.xlu0 %485
    %v487 = vsel %vm471, %v460, 0.0
    %488 = vadd.xlane.f32.xlu0 %v487
    %v489 = vpop.xlane.xlu0 %488
    %v490 = vsel %vm471, %v461, 0.0
    %491 = vadd.xlane.f32.xlu0 %v490
    %v492 = vpop.xlane.xlu0 %491
    %v493 = vsel %vm471, %v462, 0.0
    %494 = vadd.xlane.f32.xlu0 %v493
    %v495 = vpop.xlane.xlu0 %494
    %v496 = vsel %vm471, %v463, 0.0
    %497 = vadd.xlane.f32.xlu0 %v496
    %v498 = vpop.xlane.xlu0 %497
    %v499 = vsel %vm471, %v464, 0.0
    %500 = vadd.xlane.f32.xlu0 %v499
    %v501 = vpop.xlane.xlu0 %500
    %v502 = vsel %vm471, %v465, 0.0
    %503 = vadd.xlane.f32.xlu0 %v502
    %v504 = vpop.xlane.xlu0 %503
    %v505 = vsel %vm471, %v466, 0.0
    %506 = vadd.xlane.f32.xlu0 %v505
    %v507 = vpop.xlane.xlu0 %506
    %v508 = vsel %vm471, %v467, 0.0
    %509 = vadd.xlane.f32.xlu0 %v508
    %v510 = vpop.xlane.xlu0 %509
    %v511 = vsel %vm471, %v468, 0.0
    %512 = vadd.xlane.f32.xlu0 %v511
    %v513 = vpop.xlane.xlu0 %512
    %v514 = vsel %vm471, %v469, 0.0
    %515 = vadd.xlane.f32.xlu0 %v514
    %v516 = vpop.xlane.xlu0 %515
    %v517 = vsel %vm471, %v470, 0.0
    %518 = vadd.xlane.f32.xlu0 %v517
    %v519 = vpop.xlane.xlu0 %518
    %v520 = vstv %s30
    %v521 = vadd.f32 %v474, %v520
    %v522 = vadd.f32 %v477, %v520
    %v523 = vadd.f32 %v480, %v520
    %v524 = vadd.f32 %v483, %v520
    %v525 = vadd.f32 %v486, %v520
    %v526 = vadd.f32 %v489, %v520
    %v527 = vadd.f32 %v492, %v520
    %v528 = vadd.f32 %v495, %v520
    %v529 = vadd.f32 %v498, %v520
    %v530 = vadd.f32 %v501, %v520
    %v531 = vadd.f32 %v504, %v520
    %v532 = vadd.f32 %v507, %v520
    %v533 = vadd.f32 %v510, %v520
    %v534 = vadd.f32 %v513, %v520
    %v535 = vadd.f32 %v516, %v520
    %v536 = vadd.f32 %v519, %v520
    %v553 = vlaneseq
    %v554 = vand.u32 %v553, 127
    %v555 = vlaneseq
    %v556 = vshrl.u32 %v555, 7
    %v557 = vsub.s32 %v554, %v556
    %v558 = vrot.slane %v521, %v557
    %v559 = vadd.s32 %v554, 4294967288
    %v560 = vlaneseq
    %v561 = vshrl.u32 %v560, 7
    %v562 = vsub.s32 %v559, %v561
    %v563 = vrot.slane %v522, %v562
    %vm564 = vcmask 130112
    %v565 = vsel %vm564, %v563, %v558
    %v566 = vadd.s32 %v554, 4294967280
    %v567 = vlaneseq
    %v568 = vshrl.u32 %v567, 7
    %v569 = vsub.s32 %v566, %v568
    %v570 = vrot.slane %v523, %v569
    %vm571 = vcmask 195712
    %v572 = vsel %vm571, %v570, %v565
    %v573 = vadd.s32 %v554, 4294967272
    %v574 = vlaneseq
    %v575 = vshrl.u32 %v574, 7
    %v576 = vsub.s32 %v573, %v575
    %v577 = vrot.slane %v524, %v576
    %vm578 = vcmask 261312
    %v579 = vsel %vm578, %v577, %v572
    %v580 = vadd.s32 %v554, 4294967264
    %v581 = vlaneseq
    %v582 = vshrl.u32 %v581, 7
    %v583 = vsub.s32 %v580, %v582
    %v584 = vrot.slane %v525, %v583
    %vm585 = vcmask 326912
    %v586 = vsel %vm585, %v584, %v579
    %v587 = vadd.s32 %v554, 4294967256
    %v588 = vlaneseq
    %v589 = vshrl.u32 %v588, 7
    %v590 = vsub.s32 %v587, %v589
    %v591 = vrot.slane %v526, %v590
    %vm592 = vcmask 392512
    %v593 = vsel %vm592, %v591, %v586
    %v594 = vadd.s32 %v554, 4294967248
    %v595 = vlaneseq
    %v596 = vshrl.u32 %v595, 7
    %v597 = vsub.s32 %v594, %v596
    %v598 = vrot.slane %v527, %v597
    %vm599 = vcmask 458112
    %v600 = vsel %vm599, %v598, %v593
    %v601 = vadd.s32 %v554, 4294967240
    %v602 = vlaneseq
    %v603 = vshrl.u32 %v602, 7
    %v604 = vsub.s32 %v601, %v603
    %v605 = vrot.slane %v528, %v604
    %vm606 = vcmask 523712
    %v607 = vsel %vm606, %v605, %v600
    %v608 = vadd.s32 %v554, 4294967232
    %v609 = vlaneseq
    %v610 = vshrl.u32 %v609, 7
    %v611 = vsub.s32 %v608, %v610
    %v612 = vrot.slane %v529, %v611
    %vm613 = vcmask 589312
    %v614 = vsel %vm613, %v612, %v607
    %v615 = vadd.s32 %v554, 4294967224
    %v616 = vlaneseq
    %v617 = vshrl.u32 %v616, 7
    %v618 = vsub.s32 %v615, %v617
    %v619 = vrot.slane %v530, %v618
    %vm620 = vcmask 654912
    %v621 = vsel %vm620, %v619, %v614
    %v622 = vadd.s32 %v554, 4294967216
    %v623 = vlaneseq
    %v624 = vshrl.u32 %v623, 7
    %v625 = vsub.s32 %v622, %v624
    %v626 = vrot.slane %v531, %v625
    %vm627 = vcmask 720512
    %v628 = vsel %vm627, %v626, %v621
    %v629 = vadd.s32 %v554, 4294967208
    %v630 = vlaneseq
    %v631 = vshrl.u32 %v630, 7
    %v632 = vsub.s32 %v629, %v631
    %v633 = vrot.slane %v532, %v632
    %vm634 = vcmask 786112
    %v635 = vsel %vm634, %v633, %v628
    %v636 = vadd.s32 %v554, 4294967200
    %v637 = vlaneseq
    %v638 = vshrl.u32 %v637, 7
    %v639 = vsub.s32 %v636, %v638
    %v640 = vrot.slane %v533, %v639
    %vm641 = vcmask 851712
    %v642 = vsel %vm641, %v640, %v635
    %v643 = vadd.s32 %v554, 4294967192
    %v644 = vlaneseq
    %v645 = vshrl.u32 %v644, 7
    %v646 = vsub.s32 %v643, %v645
    %v647 = vrot.slane %v534, %v646
    %vm648 = vcmask 917312
    %v649 = vsel %vm648, %v647, %v642
    %v650 = vadd.s32 %v554, 4294967184
    %v651 = vlaneseq
    %v652 = vshrl.u32 %v651, 7
    %v653 = vsub.s32 %v650, %v652
    %v654 = vrot.slane %v535, %v653
    %vm655 = vcmask 982912
    %v656 = vsel %vm655, %v654, %v649
    %v657 = vadd.s32 %v554, 4294967176
    %v658 = vlaneseq
    %v659 = vshrl.u32 %v658, 7
    %v660 = vsub.s32 %v657, %v659
    %v661 = vrot.slane %v536, %v660
    %vm662 = vcmask 1048512
    %v663 = vsel %vm662, %v661, %v656
    %665 = vst [vmem:[#allocation3] sm:$0x1] %v663
    // Predicated region
    $region30: #{tpu_custom_call.1} parent=1 // pred_check
      _
    $region31: #{tpu_custom_call.1} parent=1 // pred_check_branch
      %667 = sbr.rel (0) target = $region33
    $region32: #{tpu_custom_call.1} parent=1 // pred_region
      %s669 = ssub.s32 16, 16
      %670 = vsyncadd [#allocation4], %s669
      %s672 = sshll.u32 [#allocation3], 4
      %s673 = int_to_ptr.vmem [resolvable:$true] %s672
      %675 = dma.vmem_to_hbm [thread:$0]  %s673, 16, %s7, [#allocation4]
    $region33: #{tpu_custom_call.1} parent=1 // pred_fallthru
      _
    // Predicated region
    $region34: #{tpu_custom_call.1} parent=1 // pred_check
      _
    $region35: #{tpu_custom_call.1} parent=1 // pred_check_branch
      %677 = sbr.rel (0) target = $region37
    $region36: #{tpu_custom_call.1} parent=1 // pred_region
      %678 = dma.done [#allocation4], 16
    $region37: #{tpu_custom_call.1} parent=1 // pred_fallthru
      _
    %679 = vsyncpa [#allocation4], 1

</llo_original>
